<compile_context>
chip_gen: v7x
topology: tpu7x:2x2x1
jax: 0.10.0
libtpu: 0.0.40
codegen_flags: <defaults>
</compile_context>

<pallas_src>
import functools

import jax
import jax.numpy as jnp
from jax import lax
from jax.experimental import pallas as pl
from jax.experimental.pallas import tpu as pltpu


_SUB_ROWS = 256       # folded rows per inner sub-chunk (M per MXU matmul)
_TARGET_TILE = 4096   # folded rows per grid step (~2 MB x + 1 MB out per step)
_MIN_LANES = 128      # fold batch rows until the feature axis fills a vreg's lanes


def _round_up(x, m):
    return ((x + m - 1) // m) * m


def _pick_fold(input_dim, hidden_dim):
    """Fold factor: pack `fold` batch rows along the lane axis so activations are
    >= 128 lanes wide. Returns 1 if features are already wide."""
    f = 1
    narrow = min(input_dim, hidden_dim)
    while f * narrow < _MIN_LANES and f < 32:
        f *= 2
    return f


def _choose_tiling(rows):
    """rows = folded row count. Returns (batch_tile, sub_rows).

    Small batches (rows <= 256): one exact block (rounded to 8 sublanes) -> grid = 1,
    no raggedness, no pointless split on single-TC v5e/v6e.
    Large batches: bytes-targeted tile (multiple of _SUB_ROWS, <= rows); the ragged
    last grid step is masked by Pallas at writeback.
    """
    if rows <= _SUB_ROWS:
        tile = max(8, _round_up(rows, 8))
        return tile, tile
    tile = min(_TARGET_TILE, (rows // _SUB_ROWS) * _SUB_ROWS)
    return tile, _SUB_ROWS
    # TODO(synk): make this generation-aware via pltpu.get_tpu_info (e.g. force >=2
    # even grid steps only on dual-TC v7x).


def _actor_mlp_kernel(x_ref, w1_ref, b1_ref, w2_ref, b2_ref, w3_ref, b3_ref,
                      o_ref, *, sub_rows):
    """Fused 3-layer MLP forward for one (lane-folded) batch tile.

    The tile is processed in `sub_rows`-row sub-chunks in an unrolled fori_loop:
    matmul -> bias+ReLU -> matmul -> bias+ReLU -> matmul -> store. Matmuls accumulate
    in f32 on the MXU; weights/biases stay VMEM-resident (loaded per chunk, so live
    ranges stay short and nothing spills).
    """
    n_sub = o_ref.shape[0] // sub_rows  # static: block rows are a multiple of sub_rows

    def body(s, carry):
        r = pl.multiple_of(s * sub_rows, sub_rows)
        x = x_ref[pl.ds(r, sub_rows), :]
        h1 = jnp.maximum(
            jnp.dot(x, w1_ref[...], preferred_element_type=jnp.float32) + b1_ref[...],
            0.0)
        h2 = jnp.maximum(
            jnp.dot(h1, w2_ref[...], preferred_element_type=jnp.float32) + b2_ref[...],
            0.0)
        out = jnp.dot(h2, w3_ref[...], preferred_element_type=jnp.float32) + b3_ref[...]
        o_ref[pl.ds(r, sub_rows), :] = out.astype(o_ref.dtype)
        return carry

    lax.fori_loop(0, n_sub, body, 0, unroll=True)


@jax.jit
def actor_forward(x, w1, b1, w2, b2, w3, b3):
    """ActorModel.forward(inputs) as a Pallas kernel.

    x  : [B, input_dim]
    w1 : [input_dim, hidden_dim],  b1 : [1, hidden_dim]
    w2 : [hidden_dim, hidden_dim], b2 : [1, hidden_dim]
    w3 : [hidden_dim, output_dim], b3 : [1, output_dim]
    returns: [B, output_dim]
    """
    B, input_dim = x.shape
    hidden_dim = w1.shape[1]
    output_dim = w3.shape[1]
    dtype = x.dtype

    fold = _pick_fold(input_dim, hidden_dim)

    # --- lane fold: pack `fold` batch rows along the lane axis (free reshape) ---
    B_f = _round_up(B, fold)
    if B_f != B:
        # TODO(synk): this rare path (B % fold != 0) still materializes one padded
        # copy of x; it pads at most fold-1 rows.
        x = jnp.pad(x, ((0, B_f - B), (0, 0)))
    rows = B_f // fold
    xf = x.reshape(rows, fold * input_dim)

    # Block-diagonal weights / lane-tiled biases (tiny, built on device).
    eye = jnp.eye(fold, dtype=dtype)
    w1f = jnp.kron(eye, w1.astype(dtype))        # [fold*in,  fold*hid]
    w2f = jnp.kron(eye, w2.astype(dtype))        # [fold*hid, fold*hid]
    w3f = jnp.kron(eye, w3.astype(dtype))        # [fold*hid, fold*out]
    b1f = jnp.tile(b1.astype(dtype), (1, fold))  # [1, fold*hid]
    b2f = jnp.tile(b2.astype(dtype), (1, fold))
    b3f = jnp.tile(b3.astype(dtype), (1, fold))  # [1, fold*out]

    batch_tile, sub_rows = _choose_tiling(rows)

    rows_p = rows
    if rows <= _SUB_ROWS and batch_tile != rows:
        # Tiny-batch path: pad to one exact (multiple-of-8-sublane) block. Cheap copy.
        xf = jnp.pad(xf, ((0, batch_tile - rows), (0, 0)))
        rows_p = batch_tile

    grid = (pl.cdiv(rows_p, batch_tile),)

    in_dimf = fold * input_dim
    hid_dimf = fold * hidden_dim
    out_dimf = fold * output_dim

    # Weights/biases (<0.5 MB) stay fully VMEM-resident (constant block index);
    # only folded activations are tiled along the batch axis.
    in_specs = [
        pl.BlockSpec((batch_tile, in_dimf), lambda i: (i, 0)),   # x tile
        pl.BlockSpec((in_dimf, hid_dimf), lambda i: (0, 0)),     # w1
        pl.BlockSpec((1, hid_dimf), lambda i: (0, 0)),           # b1
        pl.BlockSpec((hid_dimf, hid_dimf), lambda i: (0, 0)),    # w2
        pl.BlockSpec((1, hid_dimf), lambda i: (0, 0)),           # b2
        pl.BlockSpec((hid_dimf, out_dimf), lambda i: (0, 0)),    # w3
        pl.BlockSpec((1, out_dimf), lambda i: (0, 0)),           # b3
    ]
    out_spec = pl.BlockSpec((batch_tile, out_dimf), lambda i: (i, 0))

    of = pl.pallas_call(
        functools.partial(_actor_mlp_kernel, sub_rows=sub_rows),
        out_shape=jax.ShapeDtypeStruct((rows_p, out_dimf), dtype),
        grid_spec=pl.GridSpec(grid=grid, in_specs=in_specs, out_specs=out_spec),
        compiler_params=pltpu.CompilerParams(
            # TODO(synk): on v7x, try pltpu.CORE_PARALLEL / an explicit core split to
            # guarantee the batch axis shards across both TensorCores.
            dimension_semantics=("parallel",),
        ),
    )(xf, w1f, b1f, w2f, b2f, w3f, b3f)

    out = of.reshape(rows_p * fold, output_dim)   # free reshape back to [B_padded, out]
    if rows_p * fold != B:
        out = out[:B]
    return out


def init_actor_params(key, input_dim, hidden_dim, output_dim, dtype=jnp.float32):
    """Deterministic synthetic parameters (PyTorch nn.Linear init ranges, transposed)."""
    ks = jax.random.split(key, 6)
    s1 = 1.0 / jnp.sqrt(input_dim)
    s2 = 1.0 / jnp.sqrt(hidden_dim)
    w1 = jax.random.uniform(ks[0], (input_dim, hidden_dim), dtype, -s1, s1)
    b1 = jax.random.uniform(ks[1], (1, hidden_dim), dtype, -s1, s1)
    w2 = jax.random.uniform(ks[2], (hidden_dim, hidden_dim), dtype, -s2, s2)
    b2 = jax.random.uniform(ks[3], (1, hidden_dim), dtype, -s2, s2)
    w3 = jax.random.uniform(ks[4], (hidden_dim, output_dim), dtype, -s2, s2)
    b3 = jax.random.uniform(ks[5], (1, output_dim), dtype, -s2, s2)
    return w1, b1, w2, b2, w3, b3


def actor_forward_ref(x, w1, b1, w2, b2, w3, b3):
    """Pure-JAX reference matching PyTorch ActorModel.forward semantics."""
    h1 = jnp.maximum(x @ w1 + b1, 0.0)
    h2 = jnp.maximum(h1 @ w2 + b2, 0.0)
    return h2 @ w3 + b3


if __name__ == "__main__":
    key = jax.random.PRNGKey(0)
    k_p, k1, k2, k3 = jax.random.split(key, 4)

    input_dim, hidden_dim, output_dim = 32, 32, 16
    params = init_actor_params(k_p, input_dim, hidden_dim, output_dim)

    # 1) tiny batch: single exact block, fold=4 lane packing.
    x1 = jax.random.normal(k1, (8, input_dim), dtype=jnp.float32)
    o1 = jax.block_until_ready(actor_forward(x1, *params))
    r1 = actor_forward_ref(x1, *params)
    assert o1.shape == (8, output_dim)
    assert jnp.allclose(o1, r1, atol=1e-5, rtol=1e-5), "Pallas mismatch (tiny batch)"

    # 2) batch not divisible by the fold factor (fold-pad + slice path).
    x2 = jax.random.normal(k2, (30, input_dim), dtype=jnp.float32)
    o2 = jax.block_until_ready(actor_forward(x2, *params))
    r2 = actor_forward_ref(x2, *params)
    assert o2.shape == (30, output_dim)
    assert jnp.allclose(o2, r2, atol=1e-5, rtol=1e-5), "Pallas mismatch (B % fold != 0)"

    # 3) large ragged batch: multi-step grid (4096-folded-row tiles), no jnp.pad of x,
    #    masked writeback of the partial last tile, 256-row sub-chunk loop.
    x3 = jax.random.normal(k3, (33000, input_dim), dtype=jnp.float32)
    o3 = jax.block_until_ready(actor_forward(x3, *params))
    r3 = actor_forward_ref(x3, *params)
    assert o3.shape == (33000, output_dim)
    assert jnp.allclose(o3, r3, atol=1e-4, rtol=1e-4), "Pallas mismatch (large batch)"

    print("KERNEL_OK")
</pallas_src>

<mosaic_0001>
module attributes {stable_mosaic.version = 11 : i64} {
  func.func @_actor_mlp_kernel(%arg0: i32, %arg1: memref<8x128xf32, #tpu.memory_space<vmem>>, %arg2: memref<128x128xf32, #tpu.memory_space<vmem>>, %arg3: memref<1x128xf32, #tpu.memory_space<vmem>>, %arg4: memref<128x128xf32, #tpu.memory_space<vmem>>, %arg5: memref<1x128xf32, #tpu.memory_space<vmem>>, %arg6: memref<128x64xf32, #tpu.memory_space<vmem>>, %arg7: memref<1x64xf32, #tpu.memory_space<vmem>>, %arg8: memref<8x64xf32, #tpu.memory_space<vmem>>) attributes {dimension_semantics = [#tpu.dimension_semantics<parallel>], iteration_bounds = array<i64: 1>, scalar_prefetch = 0 : i64, scratch_operands = 0 : i64, tpu.core_type = #tpu.core_type<tc>, window_params = [{transform_indices = @transform_0, window_bounds = array<i64: 8, 128>}, {pipeline_mode = #tpu.pipeline_mode<synchronous>, transform_indices = @transform_1, window_bounds = array<i64: 128, 128>}, {pipeline_mode = #tpu.pipeline_mode<synchronous>, transform_indices = @transform_2, window_bounds = array<i64: 1, 128>}, {pipeline_mode = #tpu.pipeline_mode<synchronous>, transform_indices = @transform_3, window_bounds = array<i64: 128, 128>}, {pipeline_mode = #tpu.pipeline_mode<synchronous>, transform_indices = @transform_4, window_bounds = array<i64: 1, 128>}, {pipeline_mode = #tpu.pipeline_mode<synchronous>, transform_indices = @transform_5, window_bounds = array<i64: 128, 64>}, {pipeline_mode = #tpu.pipeline_mode<synchronous>, transform_indices = @transform_6, window_bounds = array<i64: 1, 64>}, {transform_indices = @transform_7, window_bounds = array<i64: 8, 64>}]} {
    %c0_i32 = arith.constant 0 : i32
    %c8_i32 = arith.constant 8 : i32
    %0 = arith.muli %c0_i32, %c8_i32 : i32
    %1 = tpu.assume_multiple %0, 8 : i32
    %2 = arith.index_cast %1 : i32 to index
    %c0 = arith.constant 0 : index
    %3 = vector.load %arg1[%2, %c0] : memref<8x128xf32, #tpu.memory_space<vmem>>, vector<8x128xf32>
    %c0_0 = arith.constant 0 : index
    %c0_1 = arith.constant 0 : index
    %4 = vector.load %arg2[%c0_0, %c0_1] : memref<128x128xf32, #tpu.memory_space<vmem>>, vector<128x128xf32>
    %cst = arith.constant dense<0.000000e+00> : vector<8x128xf32>
    %5 = tpu.matmul %3, %4, %cst {dimension_numbers = #tpu.dot_dimension_numbers<[1], [0], [0], [1], [0, 0, 1, 1], [], []>} : vector<8x128xf32>, vector<128x128xf32>, vector<8x128xf32> -> vector<8x128xf32>
    %c0_2 = arith.constant 0 : index
    %c0_3 = arith.constant 0 : index
    %6 = vector.load %arg3[%c0_2, %c0_3] : memref<1x128xf32, #tpu.memory_space<vmem>>, vector<1x128xf32>
    %7 = vector.broadcast %6 : vector<1x128xf32> to vector<8x128xf32>
    %8 = arith.addf %5, %7 : vector<8x128xf32>
    %cst_4 = arith.constant 0.000000e+00 : f32
    %9 = vector.broadcast %cst_4 : f32 to vector<8x128xf32>
    %10 = arith.maximumf %8, %9 : vector<8x128xf32>
    %c0_5 = arith.constant 0 : index
    %c0_6 = arith.constant 0 : index
    %11 = vector.load %arg4[%c0_5, %c0_6] : memref<128x128xf32, #tpu.memory_space<vmem>>, vector<128x128xf32>
    %cst_7 = arith.constant dense<0.000000e+00> : vector<8x128xf32>
    %12 = tpu.matmul %10, %11, %cst_7 {dimension_numbers = #tpu.dot_dimension_numbers<[1], [0], [0], [1], [0, 0, 1, 1], [], []>} : vector<8x128xf32>, vector<128x128xf32>, vector<8x128xf32> -> vector<8x128xf32>
    %c0_8 = arith.constant 0 : index
    %c0_9 = arith.constant 0 : index
    %13 = vector.load %arg5[%c0_8, %c0_9] : memref<1x128xf32, #tpu.memory_space<vmem>>, vector<1x128xf32>
    %14 = vector.broadcast %13 : vector<1x128xf32> to vector<8x128xf32>
    %15 = arith.addf %12, %14 : vector<8x128xf32>
    %cst_10 = arith.constant 0.000000e+00 : f32
    %16 = vector.broadcast %cst_10 : f32 to vector<8x128xf32>
    %17 = arith.maximumf %15, %16 : vector<8x128xf32>
    %c0_11 = arith.constant 0 : index
    %c0_12 = arith.constant 0 : index
    %18 = vector.load %arg6[%c0_11, %c0_12] : memref<128x64xf32, #tpu.memory_space<vmem>>, vector<128x64xf32>
    %cst_13 = arith.constant dense<0.000000e+00> : vector<8x64xf32>
    %19 = tpu.matmul %17, %18, %cst_13 {dimension_numbers = #tpu.dot_dimension_numbers<[1], [0], [0], [1], [0, 0, 1, 1], [], []>} : vector<8x128xf32>, vector<128x64xf32>, vector<8x64xf32> -> vector<8x64xf32>
    %c0_14 = arith.constant 0 : index
    %c0_15 = arith.constant 0 : index
    %20 = vector.load %arg7[%c0_14, %c0_15] : memref<1x64xf32, #tpu.memory_space<vmem>>, vector<1x64xf32>
    %21 = vector.broadcast %20 : vector<1x64xf32> to vector<8x64xf32>
    %22 = arith.addf %19, %21 : vector<8x64xf32>
    %23 = arith.index_cast %1 : i32 to index
    %c0_16 = arith.constant 0 : index
    %24 = vector.load %arg8[%23, %c0_16] : memref<8x64xf32, #tpu.memory_space<vmem>>, vector<8x64xf32>
    tpu.vector_store %arg8[%23, %c0_16], %22 {strides = array<i32>} : memref<8x64xf32, #tpu.memory_space<vmem>>, vector<8x64xf32>,
    %c1_i32 = arith.constant 1 : i32
    return
  }
  func.func @transform_0(%arg0: i32) -> (i32, i32) {
    %c0_i32 = arith.constant 0 : i32
    %c0_i32_0 = arith.constant 0 : i32
    return %arg0, %c0_i32 : i32, i32
  }
  func.func @transform_1(%arg0: i32) -> (i32, i32) {
    %c0_i32 = arith.constant 0 : i32
    %c0_i32_0 = arith.constant 0 : i32
    %c0_i32_1 = arith.constant 0 : i32
    return %c0_i32, %c0_i32_0 : i32, i32
  }
  func.func @transform_2(%arg0: i32) -> (i32, i32) {
    %c0_i32 = arith.constant 0 : i32
    %c0_i32_0 = arith.constant 0 : i32
    %c0_i32_1 = arith.constant 0 : i32
    return %c0_i32, %c0_i32_0 : i32, i32
  }
  func.func @transform_3(%arg0: i32) -> (i32, i32) {
    %c0_i32 = arith.constant 0 : i32
    %c0_i32_0 = arith.constant 0 : i32
    %c0_i32_1 = arith.constant 0 : i32
    return %c0_i32, %c0_i32_0 : i32, i32
  }
  func.func @transform_4(%arg0: i32) -> (i32, i32) {
    %c0_i32 = arith.constant 0 : i32
    %c0_i32_0 = arith.constant 0 : i32
    %c0_i32_1 = arith.constant 0 : i32
    return %c0_i32, %c0_i32_0 : i32, i32
  }
  func.func @transform_5(%arg0: i32) -> (i32, i32) {
    %c0_i32 = arith.constant 0 : i32
    %c0_i32_0 = arith.constant 0 : i32
    %c0_i32_1 = arith.constant 0 : i32
    return %c0_i32, %c0_i32_0 : i32, i32
  }
  func.func @transform_6(%arg0: i32) -> (i32, i32) {
    %c0_i32 = arith.constant 0 : i32
    %c0_i32_0 = arith.constant 0 : i32
    %c0_i32_1 = arith.constant 0 : i32
    return %c0_i32, %c0_i32_0 : i32, i32
  }
  func.func @transform_7(%arg0: i32) -> (i32, i32) {
    %c0_i32 = arith.constant 0 : i32
    %c0_i32_0 = arith.constant 0 : i32
    return %arg0, %c0_i32 : i32, i32
  }
}

</mosaic_0001>

<llo_original>
// kernel: actor_forward.1
$region0: #{actor_forward.1}
  #allocation0 [shape = 'u32[]', space=smem, size = 0x4, offset = 0x4, fixed_abs, tag = 'smem constant byte address 0x4 - core index']
  #allocation1 [shape = 'u32[144,128]{1,0:T(1,128)}', space=vmem, size = 0x12000, scoped, tag = 'internal scratch']
  %s0 = inlined_call_operand.vmem [shape: f32[8,128], index: 0, kind: input, shape index: {}]
  %s1 = inlined_call_operand.vmem [shape: f32[128,128], index: 1, kind: input, shape index: {}]
  %s2 = inlined_call_operand.vmem [shape: f32[1,128], index: 2, kind: input, shape index: {}]
  %s3 = inlined_call_operand.vmem [shape: f32[128,128], index: 3, kind: input, shape index: {}]
  %s4 = inlined_call_operand.vmem [shape: f32[1,128], index: 4, kind: input, shape index: {}]
  %s5 = inlined_call_operand.vmem [shape: f32[128,64], index: 5, kind: input, shape index: {}]
  %s6 = inlined_call_operand.vmem [shape: f32[1,64], index: 6, kind: input, shape index: {}]
  %s7 = inlined_call_operand.vmem [shape: f32[8,64], index: 7, kind: output, shape index: {}]
  %s8 = sld [smem:[#allocation0]]
  $region38: #{actor_forward.1} parent=0
    _
  %s10 = ssub.s32 1, %s8
  %s11 = scalar_select 0, %s10, %s8
  // Predicated region
  $region2: #{actor_forward.1} parent=0 // pred_check
    _
  $region3: #{actor_forward.1} parent=0 // pred_check_branch
    %13 = sbr.rel (0) target = $region5
  $region4: #{actor_forward.1} parent=0 // pred_region
    _
  $region5: #{actor_forward.1} parent=0 // pred_fallthru
    _
  // Predicated region
  $region6: #{actor_forward.1} parent=0 // pred_check
    _
  $region7: #{actor_forward.1} parent=0 // pred_check_branch
    %15 = sbr.rel (0) target = $region9
  $region8: #{actor_forward.1} parent=0 // pred_region
    _
  $region9: #{actor_forward.1} parent=0 // pred_fallthru
    _
  // Predicated region
  $region10: #{actor_forward.1} parent=0 // pred_check
    _
  $region11: #{actor_forward.1} parent=0 // pred_check_branch
    %17 = sbr.rel (0) target = $region13
  $region12: #{actor_forward.1} parent=0 // pred_region
    _
  $region13: #{actor_forward.1} parent=0 // pred_fallthru
    _
  // Predicated region
  $region14: #{actor_forward.1} parent=0 // pred_check
    _
  $region15: #{actor_forward.1} parent=0 // pred_check_branch
    %19 = sbr.rel (0) target = $region17
  $region16: #{actor_forward.1} parent=0 // pred_region
    _
  $region17: #{actor_forward.1} parent=0 // pred_fallthru
    _
  // Predicated region
  $region18: #{actor_forward.1} parent=0 // pred_check
    _
  $region19: #{actor_forward.1} parent=0 // pred_check_branch
    %21 = sbr.rel (0) target = $region21
  $region20: #{actor_forward.1} parent=0 // pred_region
    _
  $region21: #{actor_forward.1} parent=0 // pred_fallthru
    _
  // Predicated region
  $region22: #{actor_forward.1} parent=0 // pred_check
    _
  $region23: #{actor_forward.1} parent=0 // pred_check_branch
    %23 = sbr.rel (0) target = $region25
  $region24: #{actor_forward.1} parent=0 // pred_region
    _
  $region25: #{actor_forward.1} parent=0 // pred_fallthru
    _
  // Predicated region
  $region26: #{actor_forward.1} parent=0 // pred_check
    _
  $region27: #{actor_forward.1} parent=0 // pred_check_branch
    %25 = sbr.rel (0) target = $region29
  $region28: #{actor_forward.1} parent=0 // pred_region
    _
  $region29: #{actor_forward.1} parent=0 // pred_fallthru
    _
  %v26 = vld [vmem:[%s0] sm:$0xff]
  %v27 = vld [vmem:[%s1] sm:$0xff]
  %v28 = vld [vmem:[%s1 + $0x8] sm:$0xff]
  %v29 = vld [vmem:[%s1 + $0x10] sm:$0xff]
  %v30 = vld [vmem:[%s1 + $0x18] sm:$0xff]
  %v31 = vld [vmem:[%s1 + $0x20] sm:$0xff]
  %v32 = vld [vmem:[%s1 + $0x28] sm:$0xff]
  %v33 = vld [vmem:[%s1 + $0x30] sm:$0xff]
  %v34 = vld [vmem:[%s1 + $0x38] sm:$0xff]
  %v35 = vld [vmem:[%s1 + $0x40] sm:$0xff]
  %v36 = vld [vmem:[%s1 + $0x48] sm:$0xff]
  %v37 = vld [vmem:[%s1 + $0x50] sm:$0xff]
  %v38 = vld [vmem:[%s1 + $0x58] sm:$0xff]
  %v39 = vld [vmem:[%s1 + $0x60] sm:$0xff]
  %v40 = vld [vmem:[%s1 + $0x68] sm:$0xff]
  %v41 = vld [vmem:[%s1 + $0x70] sm:$0xff]
  %v42 = vld [vmem:[%s1 + $0x78] sm:$0xff]
  %v43 = vld [vmem:[%s2] sm:$0x1]
  %v45 = vlaneseq
  %v46 = vshrl.u32 %v45, 7
  %v47 = vsub.s32 0, %v46
  %v48 = vrot.slane %v43, %v47
  %50 = vmatprep.subr.mxu0 0.0
  %51 = vmatpush1.msra.mxu0 %v27
  %52 = vmatprep.subr.mxu0 0.0
  %53 = vmatpush1.msra.mxu0 %v28
  %54 = vmatprep.subr.mxu0 0.0
  %55 = vmatpush1.msra.mxu0 %v29
  %56 = vmatprep.subr.mxu0 0.0
  %57 = vmatpush1.msra.mxu0 %v30
  %58 = vmatprep.subr.mxu0 0.0
  %59 = vmatpush1.msra.mxu0 %v31
  %60 = vmatprep.subr.mxu0 0.0
  %61 = vmatpush1.msra.mxu0 %v32
  %62 = vmatprep.subr.mxu0 0.0
  %63 = vmatpush1.msra.mxu0 %v33
  %64 = vmatprep.subr.mxu0 0.0
  %65 = vmatpush1.msra.mxu0 %v34
  %66 = vmatprep.subr.mxu0 0.0
  %67 = vmatpush1.msra.mxu0 %v35
  %68 = vmatprep.subr.mxu0 0.0
  %69 = vmatpush1.msra.mxu0 %v36
  %70 = vmatprep.subr.mxu0 0.0
  %71 = vmatpush1.msra.mxu0 %v37
  %72 = vmatprep.subr.mxu0 0.0
  %73 = vmatpush1.msra.mxu0 %v38
  %74 = vmatprep.subr.mxu0 0.0
  %75 = vmatpush1.msra.mxu0 %v39
  %76 = vmatprep.subr.mxu0 0.0
  %77 = vmatpush1.msra.mxu0 %v40
  %78 = vmatprep.subr.mxu0 0.0
  %79 = vmatpush1.msra.mxu0 %v41
  %80 = vmatprep.subr.mxu0 0.0
  %81 = vmatpush1.msra.mxu0 %v42
  %82 = vmatprep.subr.mxu0 0.0
  %83 = vmatpush1.msra.mxu0 0.0
  %84 = vmatprep.subr.mxu0 0.0
  %85 = vmatpush1.msra.mxu0 0.0
  %86 = vmatprep.subr.mxu0 0.0
  %87 = vmatpush1.msra.mxu0 0.0
  %88 = vmatprep.subr.mxu0 0.0
  %89 = vmatpush1.msra.mxu0 0.0
  %90 = vmatprep.subr.mxu0 0.0
  %91 = vmatpush1.msra.mxu0 0.0
  %92 = vmatprep.subr.mxu0 0.0
  %93 = vmatpush1.msra.mxu0 0.0
  %94 = vmatprep.subr.mxu0 0.0
  %95 = vmatpush1.msra.mxu0 0.0
  %96 = vmatprep.subr.mxu0 0.0
  %97 = vmatpush1.msra.mxu0 0.0
  %98 = vmatprep.subr.mxu0 0.0
  %99 = vmatpush1.msra.mxu0 0.0
  %100 = vmatprep.subr.mxu0 0.0
  %101 = vmatpush1.msra.mxu0 0.0
  %102 = vmatprep.subr.mxu0 0.0
  %103 = vmatpush1.msra.mxu0 0.0
  %104 = vmatprep.subr.mxu0 0.0
  %105 = vmatpush1.msra.mxu0 0.0
  %106 = vmatprep.subr.mxu0 0.0
  %107 = vmatpush1.msra.mxu0 0.0
  %108 = vmatprep.subr.mxu0 0.0
  %109 = vmatpush1.msra.mxu0 0.0
  %110 = vmatprep.subr.mxu0 0.0
  %111 = vmatpush1.msra.mxu0 0.0
  %112 = vmatprep.subr.mxu0 0.0
  %113 = vmatpush1.msra.mxu0 0.0
  %114 = vmatprep.mubr.f32.mxu0 0.0
  %115 = vmatmul.mubr.f32.gmra.mrb[0].mxu0 %v26
  %v116 = vpop.f32.mrb[0].mxu0
  %v117 = vadd.f32 %v48, %v116
  %v118 = vpop.f32.mrb[0].mxu0
  %119 = vdwg.mxu0
  %v120 = vmax.f32 %v117, 0.0
  %v121 = vld [vmem:[%s3] sm:$0xff]
  %v122 = vld [vmem:[%s3 + $0x8] sm:$0xff]
  %v123 = vld [vmem:[%s3 + $0x10] sm:$0xff]
  %v124 = vld [vmem:[%s3 + $0x18] sm:$0xff]
  %v125 = vld [vmem:[%s3 + $0x20] sm:$0xff]
  %v126 = vld [vmem:[%s3 + $0x28] sm:$0xff]
  %v127 = vld [vmem:[%s3 + $0x30] sm:$0xff]
  %v128 = vld [vmem:[%s3 + $0x38] sm:$0xff]
  %v129 = vld [vmem:[%s3 + $0x40] sm:$0xff]
  %v130 = vld [vmem:[%s3 + $0x48] sm:$0xff]
  %v131 = vld [vmem:[%s3 + $0x50] sm:$0xff]
  %v132 = vld [vmem:[%s3 + $0x58] sm:$0xff]
  %v133 = vld [vmem:[%s3 + $0x60] sm:$0xff]
  %v134 = vld [vmem:[%s3 + $0x68] sm:$0xff]
  %v135 = vld [vmem:[%s3 + $0x70] sm:$0xff]
  %v136 = vld [vmem:[%s3 + $0x78] sm:$0xff]
  %v137 = vld [vmem:[%s4] sm:$0x1]
  %v139 = vlaneseq
  %v140 = vshrl.u32 %v139, 7
  %v141 = vsub.s32 0, %v140
  %v142 = vrot.slane %v137, %v141
  %144 = vmatprep.subr.mxu0 0.0
  %145 = vmatpush1.msra.mxu0 %v121
  %146 = vmatprep.subr.mxu0 0.0
  %147 = vmatpush1.msra.mxu0 %v122
  %148 = vmatprep.subr.mxu0 0.0
  %149 = vmatpush1.msra.mxu0 %v123
  %150 = vmatprep.subr.mxu0 0.0
  %151 = vmatpush1.msra.mxu0 %v124
  %152 = vmatprep.subr.mxu0 0.0
  %153 = vmatpush1.msra.mxu0 %v125
  %154 = vmatprep.subr.mxu0 0.0
  %155 = vmatpush1.msra.mxu0 %v126
  %156 = vmatprep.subr.mxu0 0.0
  %157 = vmatpush1.msra.mxu0 %v127
  %158 = vmatprep.subr.mxu0 0.0
  %159 = vmatpush1.msra.mxu0 %v128
  %160 = vmatprep.subr.mxu0 0.0
  %161 = vmatpush1.msra.mxu0 %v129
  %162 = vmatprep.subr.mxu0 0.0
  %163 = vmatpush1.msra.mxu0 %v130
  %164 = vmatprep.subr.mxu0 0.0
  %165 = vmatpush1.msra.mxu0 %v131
  %166 = vmatprep.subr.mxu0 0.0
  %167 = vmatpush1.msra.mxu0 %v132
  %168 = vmatprep.subr.mxu0 0.0
  %169 = vmatpush1.msra.mxu0 %v133
  %170 = vmatprep.subr.mxu0 0.0
  %171 = vmatpush1.msra.mxu0 %v134
  %172 = vmatprep.subr.mxu0 0.0
  %173 = vmatpush1.msra.mxu0 %v135
  %174 = vmatprep.subr.mxu0 0.0
  %175 = vmatpush1.msra.mxu0 %v136
  %176 = vmatprep.subr.mxu0 0.0
  %177 = vmatpush1.msra.mxu0 0.0
  %178 = vmatprep.subr.mxu0 0.0
  %179 = vmatpush1.msra.mxu0 0.0
  %180 = vmatprep.subr.mxu0 0.0
  %181 = vmatpush1.msra.mxu0 0.0
  %182 = vmatprep.subr.mxu0 0.0
  %183 = vmatpush1.msra.mxu0 0.0
  %184 = vmatprep.subr.mxu0 0.0
  %185 = vmatpush1.msra.mxu0 0.0
  %186 = vmatprep.subr.mxu0 0.0
  %187 = vmatpush1.msra.mxu0 0.0
  %188 = vmatprep.subr.mxu0 0.0
  %189 = vmatpush1.msra.mxu0 0.0
  %190 = vmatprep.subr.mxu0 0.0
  %191 = vmatpush1.msra.mxu0 0.0
  %192 = vmatprep.subr.mxu0 0.0
  %193 = vmatpush1.msra.mxu0 0.0
  %194 = vmatprep.subr.mxu0 0.0
  %195 = vmatpush1.msra.mxu0 0.0
  %196 = vmatprep.subr.mxu0 0.0
  %197 = vmatpush1.msra.mxu0 0.0
  %198 = vmatprep.subr.mxu0 0.0
  %199 = vmatpush1.msra.mxu0 0.0
  %200 = vmatprep.subr.mxu0 0.0
  %201 = vmatpush1.msra.mxu0 0.0
  %202 = vmatprep.subr.mxu0 0.0
  %203 = vmatpush1.msra.mxu0 0.0
  %204 = vmatprep.subr.mxu0 0.0
  %205 = vmatpush1.msra.mxu0 0.0
  %206 = vmatprep.subr.mxu0 0.0
  %207 = vmatpush1.msra.mxu0 0.0
  %208 = vmatprep.mubr.f32.mxu0 0.0
  %209 = vmatmul.mubr.f32.gmra.mrb[0].mxu0 %v120
  %v210 = vpop.f32.mrb[0].mxu0
  %v211 = vadd.f32 %v142, %v210
  %v212 = vpop.f32.mrb[0].mxu0
  %213 = vdwg.mxu0
  %v214 = vmax.f32 %v211, 0.0
  %v215 = vld [vmem:[%s5] sm:$0xff]
  %v216 = vld [vmem:[%s5 + $0x8] sm:$0xff]
  %v217 = vld [vmem:[%s5 + $0x10] sm:$0xff]
  %v218 = vld [vmem:[%s5 + $0x18] sm:$0xff]
  %v219 = vld [vmem:[%s5 + $0x20] sm:$0xff]
  %v220 = vld [vmem:[%s5 + $0x28] sm:$0xff]
  %v221 = vld [vmem:[%s5 + $0x30] sm:$0xff]
  %v222 = vld [vmem:[%s5 + $0x38] sm:$0xff]
  %v223 = vld [vmem:[%s5 + $0x40] sm:$0xff]
  %v224 = vld [vmem:[%s5 + $0x48] sm:$0xff]
  %v225 = vld [vmem:[%s5 + $0x50] sm:$0xff]
  %v226 = vld [vmem:[%s5 + $0x58] sm:$0xff]
  %v227 = vld [vmem:[%s5 + $0x60] sm:$0xff]
  %v228 = vld [vmem:[%s5 + $0x68] sm:$0xff]
  %v229 = vld [vmem:[%s5 + $0x70] sm:$0xff]
  %v230 = vld [vmem:[%s5 + $0x78] sm:$0xff]
  %v231 = vld [vmem:[%s6] sm:$0x1]
  %v233 = vlaneseq
  %v234 = vshrl.u32 %v233, 7
  %v235 = vsub.s32 0, %v234
  %v236 = vrot.slane %v231, %v235
  %238 = vmatprep.subr.mxu0 0.0
  %239 = vmatpush1.msra.mxu0 %v215
  %240 = vmatprep.subr.mxu0 0.0
  %241 = vmatpush1.msra.mxu0 %v216
  %242 = vmatprep.subr.mxu0 0.0
  %243 = vmatpush1.msra.mxu0 %v217
  %244 = vmatprep.subr.mxu0 0.0
  %245 = vmatpush1.msra.mxu0 %v218
  %246 = vmatprep.subr.mxu0 0.0
  %247 = vmatpush1.msra.mxu0 %v219
  %248 = vmatprep.subr.mxu0 0.0
  %249 = vmatpush1.msra.mxu0 %v220
  %250 = vmatprep.subr.mxu0 0.0
  %251 = vmatpush1.msra.mxu0 %v221
  %252 = vmatprep.subr.mxu0 0.0
  %253 = vmatpush1.msra.mxu0 %v222
  %254 = vmatprep.subr.mxu0 0.0
  %255 = vmatpush1.msra.mxu0 %v223
  %256 = vmatprep.subr.mxu0 0.0
  %257 = vmatpush1.msra.mxu0 %v224
  %258 = vmatprep.subr.mxu0 0.0
  %259 = vmatpush1.msra.mxu0 %v225
  %260 = vmatprep.subr.mxu0 0.0
  %261 = vmatpush1.msra.mxu0 %v226
  %262 = vmatprep.subr.mxu0 0.0
  %263 = vmatpush1.msra.mxu0 %v227
  %264 = vmatprep.subr.mxu0 0.0
  %265 = vmatpush1.msra.mxu0 %v228
  %266 = vmatprep.subr.mxu0 0.0
  %267 = vmatpush1.msra.mxu0 %v229
  %268 = vmatprep.subr.mxu0 0.0
  %269 = vmatpush1.msra.mxu0 %v230
  %270 = vmatprep.subr.mxu0 0.0
  %271 = vmatpush1.msra.mxu0 0.0
  %272 = vmatprep.subr.mxu0 0.0
  %273 = vmatpush1.msra.mxu0 0.0
  %274 = vmatprep.subr.mxu0 0.0
  %275 = vmatpush1.msra.mxu0 0.0
  %276 = vmatprep.subr.mxu0 0.0
  %277 = vmatpush1.msra.mxu0 0.0
  %278 = vmatprep.subr.mxu0 0.0
  %279 = vmatpush1.msra.mxu0 0.0
  %280 = vmatprep.subr.mxu0 0.0
  %281 = vmatpush1.msra.mxu0 0.0
  %282 = vmatprep.subr.mxu0 0.0
  %283 = vmatpush1.msra.mxu0 0.0
  %284 = vmatprep.subr.mxu0 0.0
  %285 = vmatpush1.msra.mxu0 0.0
  %286 = vmatprep.subr.mxu0 0.0
  %287 = vmatpush1.msra.mxu0 0.0
  %288 = vmatprep.subr.mxu0 0.0
  %289 = vmatpush1.msra.mxu0 0.0
  %290 = vmatprep.subr.mxu0 0.0
  %291 = vmatpush1.msra.mxu0 0.0
  %292 = vmatprep.subr.mxu0 0.0
  %293 = vmatpush1.msra.mxu0 0.0
  %294 = vmatprep.subr.mxu0 0.0
  %295 = vmatpush1.msra.mxu0 0.0
  %296 = vmatprep.subr.mxu0 0.0
  %297 = vmatpush1.msra.mxu0 0.0
  %298 = vmatprep.subr.mxu0 0.0
  %299 = vmatpush1.msra.mxu0 0.0
  %300 = vmatprep.subr.mxu0 0.0
  %301 = vmatpush1.msra.mxu0 0.0
  %302 = vmatprep.mubr.f32.mxu0 0.0
  %303 = vmatmul.mubr.f32.gmra.mrb[0].mxu0 %v214
  %v304 = vpop.f32.mrb[0].mxu0
  %v305 = vadd.f32 %v236, %v304
  %v306 = vpop.f32.mrb[0].mxu0
  %307 = vdwg.mxu0
  %vm308 = vcmask 523264
  %309 = vst.msk [vmem:[%s7] sm:$0xff] %vm308, %v305
  // Predicated region
  $region30: #{actor_forward.1} parent=0 // pred_check
    _
  $region31: #{actor_forward.1} parent=0 // pred_check_branch
    %311 = sbr.rel (0) target = $region33
  $region32: #{actor_forward.1} parent=0 // pred_region
    _
  $region33: #{actor_forward.1} parent=0 // pred_fallthru
    _
  // Predicated region
  $region34: #{actor_forward.1} parent=0 // pred_check
    _
  $region35: #{actor_forward.1} parent=0 // pred_check_branch
    %313 = sbr.rel (0) target = $region37
  $region36: #{actor_forward.1} parent=0 // pred_region
    _
  $region37: #{actor_forward.1} parent=0 // pred_fallthru
    _

</llo_original>
